<compile_context>
chip_gen: v5e
topology: v5e:2x2
jax: 0.10.0
libtpu: 0.0.40
codegen_flags: <defaults>
</compile_context>

<pallas_src>
import functools

import numpy as np
import jax
import jax.numpy as jnp
from jax import lax
from jax.experimental import pallas as pl
from jax.experimental.pallas import tpu as pltpu

# Fixed blur filter from the module's __init__ (buffer, deterministic, dyadic).
BLUR_FILTER = (1 / 4, 1 / 8, 1 / 16, 1 / 8, 1 / 16, 1 / 8, 1 / 16, 1 / 8, 1 / 16)


def _round_up(a, b):
    return (a + b - 1) // b * b


def _blur_kernel(valid_col, strips, starts_ref, counts_ref,
                 nb_ref, table_ref, out_ref):
    # starts_ref/counts_ref: (n_tiles,) int32 in SMEM (scalar prefetch)
    # nb_ref:    (TM, 9)      int32   neighborhood indices for this face tile
    # table_ref: (BP, CF)     f32/bf16 chunk of [features | validity | 0-pad] table
    # out_ref:   (TM, CF)     f32     resident across the reduction axis (accumulator)
    i = pl.program_id(0)
    j = pl.program_id(1)
    count = counts_ref[i]
    tm = nb_ref.shape[0]
    bp = table_ref.shape[0]
    dt = table_ref.dtype

    @pl.when(j == 0)
    def _init():
        out_ref[...] = jnp.zeros_like(out_ref)

    @pl.when(j < count)
    def _compute():
        # Shift the (TM, 9) indices once instead of offsetting the full (TM, BP) iota.
        base = (starts_ref[i] + j) * bp
        nb_local = nb_ref[...] - base                                   # (TM, 9) int32

        # K-strip the one-hot build + matmul so VPU and MXU overlap.
        for (k0, ks) in strips:
            col = lax.broadcasted_iota(jnp.int32, (tm, ks), 1)          # strip-local
            nb_strip = nb_local - k0                                    # (TM, 9)
            a = jnp.zeros((tm, ks), dt)
            for t in range(9):                                          # per-tap add:
                a = jnp.where(nb_strip[:, t:t + 1] == col,              # duplicates sum
                              a + jnp.asarray(BLUR_FILTER[t], dt), a)   # (3 VALU ops/tap)
            out_ref[...] += jnp.dot(a, table_ref[pl.ds(k0, ks), :],
                                    preferred_element_type=jnp.float32)

    @pl.when(j == count - 1)
    def _finalize():
        res = out_ref[...]                                              # (TM, CF) f32
        den = res[:, valid_col:valid_col + 1]                           # (TM, 1)
        # Exact divide: runs once per face tile, off the VALU critical path.
        out_ref[...] = res / den


def blur(x, face_neighborhood, face_is_pad, pad_size, *,
         block_m=256, block_p=1024, k_strip=256, table_dtype=jnp.float32):
    """x: (N, C) f32, face_neighborhood: (N, 9) int, face_is_pad: (pad_size,) bool.

    table_dtype: float32 (exact; keep on v5e) or bfloat16 (bf16-native MXU/VALU on
    v6e/v7x — dyadic taps and the validity column are exact, only features are cast).
    """
    n, c = x.shape
    x = x.astype(jnp.float32)

    # ---- sizes / rounding ---------------------------------------------------------
    cf = c + 1                                       # features + fused validity column
    cf_pad = _round_up(cf, 128)                      # lane-dense output width
    sub = 16                                         # sublane multiple (safe f32 & bf16)
    block_p = _round_up(min(block_p, _round_up(pad_size, sub)), sub)
    p_padded = _round_up(pad_size, block_p)
    total_chunks = p_padded // block_p
    last_chunk = total_chunks - 1

    block_m = _round_up(min(block_m, _round_up(n, 8)), 8)
    n_padded = _round_up(n, block_m)
    n_tiles = n_padded // block_m

    # ---- fused wrapper-side table assembly (scatter is glue; no Pallas equivalent) --
    nonpad_idx = jnp.nonzero(jnp.logical_not(face_is_pad), size=n)[0]
    table = jnp.zeros((p_padded, cf_pad), table_dtype)
    table = table.at[nonpad_idx, :c].set(x.astype(table_dtype))
    table = table.at[:pad_size, c].set(1 - face_is_pad.astype(table_dtype))

    # ---- neighbor indices, padded on the face axis (replicate last real row so the
    #      span of the last tile is unchanged and its denominator stays valid) --------
    nb = face_neighborhood.astype(jnp.int32)
    if n_padded != n:
        fill = jnp.broadcast_to(nb[n - 1:n, :], (n_padded - n, 9))
        nb = jnp.concatenate([nb, fill], axis=0)

    # ---- per-face-tile chunk span -> scalar prefetch (skips untouched P chunks) -----
    try:
        nb_host = np.asarray(jax.device_get(nb))
    except Exception:                      # traced under jit: fall back to full sweep
        nb_host = None
    if nb_host is not None:
        tiles = nb_host.reshape(n_tiles, block_m, 9)
        lo = tiles.min(axis=(1, 2)) // block_p
        hi = tiles.max(axis=(1, 2)) // block_p
        chunk_start = jnp.asarray(lo.astype(np.int32))
        chunk_count = jnp.asarray((hi - lo + 1).astype(np.int32))
        max_chunks = int((hi - lo + 1).max())
    else:
        chunk_start = jnp.zeros((n_tiles,), jnp.int32)
        chunk_count = jnp.full((n_tiles,), total_chunks, jnp.int32)
        max_chunks = total_chunks

    # ---- static K-strips inside one table chunk -------------------------------------
    ks_eff = min(_round_up(k_strip, 8), block_p)
    strips, k0 = [], 0
    while k0 < block_p:
        s = min(ks_eff, block_p - k0)
        strips.append((k0, s))
        k0 += s
    strips = tuple(strips)

    # ---- explicit VMEM budget (no oversized clamp; v7x has only 64 MiB/TC) ----------
    itemsize = jnp.dtype(table_dtype).itemsize
    est = (2 * block_p * cf_pad * itemsize            # table chunk (double-buffered)
           + 2 * block_m * 128 * 4                    # nb tile (lane-padded, 2 bufs)
           + 2 * block_m * cf_pad * 4                 # resident output tile
           + 2 * block_m * ks_eff * (itemsize + 4))   # A strip + iota/compare temps
    vmem_limit = int(est) + 8 * 1024 * 1024

    kernel = functools.partial(_blur_kernel, c, strips)
    out = pl.pallas_call(
        kernel,
        out_shape=jax.ShapeDtypeStruct((n_padded, cf_pad), jnp.float32),
        grid_spec=pltpu.PrefetchScalarGridSpec(
            num_scalar_prefetch=2,
            grid=(n_tiles, max_chunks),               # reduction (P-span) axis last
            in_specs=[
                pl.BlockSpec((block_m, 9), lambda i, j, st, ct: (i, 0)),
                pl.BlockSpec((block_p, cf_pad),
                             lambda i, j, st, ct: (jnp.minimum(st[i] + j, last_chunk), 0)),
            ],
            out_specs=pl.BlockSpec((block_m, cf_pad), lambda i, j, st, ct: (i, 0)),
        ),
        compiler_params=pltpu.CompilerParams(
            dimension_semantics=("parallel", "arbitrary"),
            vmem_limit_bytes=vmem_limit,
        ),
    )(chunk_start, chunk_count, nb, table)
    return out[:n, :c]


def _blur_reference(x, face_neighborhood, face_is_pad, pad_size):
    """Pure-JAX reference mirroring the PyTorch forward (f32, exact)."""
    n, c = x.shape
    bf = jnp.asarray(BLUR_FILTER, jnp.float32)
    nonpad_idx = jnp.nonzero(jnp.logical_not(face_is_pad), size=n)[0]
    padded_x = jnp.zeros((pad_size, c), jnp.float32).at[nonpad_idx].set(x)
    gathered = padded_x[face_neighborhood]                              # (N, 9, C)
    num = jnp.einsum("nic,i->nc", gathered, bf)
    corr = jnp.sum((1.0 - face_is_pad[face_neighborhood].astype(jnp.float32)) * bf[None, :],
                   axis=-1, keepdims=True)
    return num / corr


if __name__ == "__main__":
    key = jax.random.PRNGKey(0)
    k_x, k_nb0, k_nb1 = jax.random.split(key, 3)

    N, C = 16, 8
    PAD_SIZE = 24

    x = jax.random.normal(k_x, (N, C), jnp.float32)
    # First neighbor is always a real (non-pad) face so the denominator is never zero
    # in this test (divide-by-zero otherwise matches the PyTorch reference anyway).
    nb_first = jax.random.randint(k_nb0, (N, 1), 0, N, jnp.int32)
    nb_rest = jax.random.randint(k_nb1, (N, 8), 0, PAD_SIZE, jnp.int32)
    face_neighborhood = jnp.concatenate([nb_first, nb_rest], axis=1)
    face_is_pad = jnp.arange(PAD_SIZE) >= N            # last 8 table rows are padding

    ref = _blur_reference(x, face_neighborhood, face_is_pad, PAD_SIZE)

    # 1) Default blocks, f32 table (single chunk, single strip).
    out_f32 = blur(x, face_neighborhood, face_is_pad, PAD_SIZE, table_dtype=jnp.float32)
    jax.block_until_ready(out_f32)
    assert out_f32.shape == (N, C)
    assert jnp.allclose(out_f32, ref, atol=1e-2, rtol=1e-2), "f32 path mismatch vs reference"

    # 2) Tiny blocks to exercise multi face-tile, chunk-skipping span walk, and
    #    multi-strip reduction (2 face tiles x up to 2 P-chunks x 2 K-strips).
    out_small = blur(x, face_neighborhood, face_is_pad, PAD_SIZE,
                     block_m=8, block_p=16, k_strip=8, table_dtype=jnp.float32)
    jax.block_until_ready(out_small)
    assert out_small.shape == (N, C)
    assert jnp.allclose(out_small, ref, atol=1e-2, rtol=1e-2), "chunked path mismatch vs reference"

    # 3) bf16 table/A path (v6e/v7x throughput option; taps/one-hot exact in bf16).
    out_bf16 = blur(x, face_neighborhood, face_is_pad, PAD_SIZE, table_dtype=jnp.bfloat16)
    jax.block_until_ready(out_bf16)
    assert out_bf16.shape == (N, C)
    assert jnp.allclose(out_bf16, ref, atol=5e-2, rtol=5e-2), "bf16 path mismatch vs reference"

    print("KERNEL_OK")
</pallas_src>

<mosaic_0001>
module attributes {stable_mosaic.version = 11 : i64} {
  func.func @_blur_kernel(%arg0: i32, %arg1: i32, %arg2: memref<1xi32, #tpu.memory_space<smem>>, %arg3: memref<1xi32, #tpu.memory_space<smem>>, %arg4: memref<16x9xi32, #tpu.memory_space<vmem>>, %arg5: memref<32x128xf32, #tpu.memory_space<vmem>>, %arg6: memref<16x128xf32, #tpu.memory_space<vmem>>) attributes {dimension_semantics = [#tpu.dimension_semantics<parallel>, #tpu.dimension_semantics<arbitrary>], iteration_bounds = array<i64: 1, 1>, scalar_prefetch = 2 : i64, scratch_operands = 0 : i64, tpu.core_type = #tpu.core_type<tc>, window_params = [{transform_indices = @transform_0, window_bounds = array<i64: 16, 9>}, {transform_indices = @transform_1, window_bounds = array<i64: 32, 128>}, {transform_indices = @transform_2, window_bounds = array<i64: 16, 128>}]} {
    %0 = arith.index_cast %arg0 : i32 to index
    %1 = memref.load %arg3[%0] : memref<1xi32, #tpu.memory_space<smem>>
    %c0_i32 = arith.constant 0 : i32
    %2 = arith.cmpi eq, %arg1, %c0_i32 : i32
    %3 = arith.extui %2 : i1 to i32
    %c0_i32_0 = arith.constant 0 : i32
    %4 = arith.cmpi ne, %3, %c0_i32_0 : i32
    scf.if %4 {
      %cst = arith.constant 0.000000e+00 : f32
      %12 = vector.broadcast %cst : f32 to vector<16x128xf32>
      %c0 = arith.constant 0 : index
      %c0_3 = arith.constant 0 : index
      %13 = vector.load %arg6[%c0, %c0_3] : memref<16x128xf32, #tpu.memory_space<vmem>>, vector<16x128xf32>
      tpu.vector_store %arg6[%c0, %c0_3], %12 {strides = array<i32>} : memref<16x128xf32, #tpu.memory_space<vmem>>, vector<16x128xf32>,
    } else {
    }
    %5 = arith.cmpi slt, %arg1, %1 : i32
    %6 = arith.extui %5 : i1 to i32
    %c0_i32_1 = arith.constant 0 : i32
    %7 = arith.cmpi ne, %6, %c0_i32_1 : i32
    scf.if %7 {
      %12 = arith.index_cast %arg0 : i32 to index
      %13 = memref.load %arg2[%12] : memref<1xi32, #tpu.memory_space<smem>>
      %14 = arith.addi %13, %arg1 : i32
      %c32_i32 = arith.constant 32 : i32
      %15 = arith.muli %14, %c32_i32 : i32
      %c0 = arith.constant 0 : index
      %c0_3 = arith.constant 0 : index
      %16 = vector.load %arg4[%c0, %c0_3] : memref<16x9xi32, #tpu.memory_space<vmem>>, vector<16x9xi32>
      %17 = vector.broadcast %15 : i32 to vector<16x9xi32>
      %18 = arith.subi %16, %17 : vector<16x9xi32>
      %19 = tpu.iota {dimensions = array<i32: 1>} : vector<16x32xi32>
      %c0_i32_4 = arith.constant 0 : i32
      %20 = vector.broadcast %c0_i32_4 : i32 to vector<16x9xi32>
      %21 = arith.subi %18, %20 : vector<16x9xi32>
      %cst = arith.constant 0.000000e+00 : f32
      %22 = vector.broadcast %cst : f32 to vector<16x32xf32>
      %23 = vector.extract_strided_slice %21 {offsets = [0, 0], sizes = [16, 1], strides = [1, 1]} : vector<16x9xi32> to vector<16x1xi32>
      %24 = vector.broadcast %23 : vector<16x1xi32> to vector<16x32xi32>
      %25 = arith.cmpi eq, %24, %19 : vector<16x32xi32>
      %cst_5 = arith.constant 2.500000e-01 : f32
      %26 = vector.broadcast %cst_5 : f32 to vector<16x32xf32>
      %27 = arith.addf %22, %26 : vector<16x32xf32>
      %28 = arith.select %25, %27, %22 : vector<16x32xi1>, vector<16x32xf32>
      %29 = vector.extract_strided_slice %21 {offsets = [0, 1], sizes = [16, 1], strides = [1, 1]} : vector<16x9xi32> to vector<16x1xi32>
      %30 = vector.broadcast %29 : vector<16x1xi32> to vector<16x32xi32>
      %31 = arith.cmpi eq, %30, %19 : vector<16x32xi32>
      %cst_6 = arith.constant 1.250000e-01 : f32
      %32 = vector.broadcast %cst_6 : f32 to vector<16x32xf32>
      %33 = arith.addf %28, %32 : vector<16x32xf32>
      %34 = arith.select %31, %33, %28 : vector<16x32xi1>, vector<16x32xf32>
      %35 = vector.extract_strided_slice %21 {offsets = [0, 2], sizes = [16, 1], strides = [1, 1]} : vector<16x9xi32> to vector<16x1xi32>
      %36 = vector.broadcast %35 : vector<16x1xi32> to vector<16x32xi32>
      %37 = arith.cmpi eq, %36, %19 : vector<16x32xi32>
      %cst_7 = arith.constant 6.250000e-02 : f32
      %38 = vector.broadcast %cst_7 : f32 to vector<16x32xf32>
      %39 = arith.addf %34, %38 : vector<16x32xf32>
      %40 = arith.select %37, %39, %34 : vector<16x32xi1>, vector<16x32xf32>
      %41 = vector.extract_strided_slice %21 {offsets = [0, 3], sizes = [16, 1], strides = [1, 1]} : vector<16x9xi32> to vector<16x1xi32>
      %42 = vector.broadcast %41 : vector<16x1xi32> to vector<16x32xi32>
      %43 = arith.cmpi eq, %42, %19 : vector<16x32xi32>
      %cst_8 = arith.constant 1.250000e-01 : f32
      %44 = vector.broadcast %cst_8 : f32 to vector<16x32xf32>
      %45 = arith.addf %40, %44 : vector<16x32xf32>
      %46 = arith.select %43, %45, %40 : vector<16x32xi1>, vector<16x32xf32>
      %47 = vector.extract_strided_slice %21 {offsets = [0, 4], sizes = [16, 1], strides = [1, 1]} : vector<16x9xi32> to vector<16x1xi32>
      %48 = vector.broadcast %47 : vector<16x1xi32> to vector<16x32xi32>
      %49 = arith.cmpi eq, %48, %19 : vector<16x32xi32>
      %cst_9 = arith.constant 6.250000e-02 : f32
      %50 = vector.broadcast %cst_9 : f32 to vector<16x32xf32>
      %51 = arith.addf %46, %50 : vector<16x32xf32>
      %52 = arith.select %49, %51, %46 : vector<16x32xi1>, vector<16x32xf32>
      %53 = vector.extract_strided_slice %21 {offsets = [0, 5], sizes = [16, 1], strides = [1, 1]} : vector<16x9xi32> to vector<16x1xi32>
      %54 = vector.broadcast %53 : vector<16x1xi32> to vector<16x32xi32>
      %55 = arith.cmpi eq, %54, %19 : vector<16x32xi32>
      %cst_10 = arith.constant 1.250000e-01 : f32
      %56 = vector.broadcast %cst_10 : f32 to vector<16x32xf32>
      %57 = arith.addf %52, %56 : vector<16x32xf32>
      %58 = arith.select %55, %57, %52 : vector<16x32xi1>, vector<16x32xf32>
      %59 = vector.extract_strided_slice %21 {offsets = [0, 6], sizes = [16, 1], strides = [1, 1]} : vector<16x9xi32> to vector<16x1xi32>
      %60 = vector.broadcast %59 : vector<16x1xi32> to vector<16x32xi32>
      %61 = arith.cmpi eq, %60, %19 : vector<16x32xi32>
      %cst_11 = arith.constant 6.250000e-02 : f32
      %62 = vector.broadcast %cst_11 : f32 to vector<16x32xf32>
      %63 = arith.addf %58, %62 : vector<16x32xf32>
      %64 = arith.select %61, %63, %58 : vector<16x32xi1>, vector<16x32xf32>
      %65 = vector.extract_strided_slice %21 {offsets = [0, 7], sizes = [16, 1], strides = [1, 1]} : vector<16x9xi32> to vector<16x1xi32>
      %66 = vector.broadcast %65 : vector<16x1xi32> to vector<16x32xi32>
      %67 = arith.cmpi eq, %66, %19 : vector<16x32xi32>
      %cst_12 = arith.constant 1.250000e-01 : f32
      %68 = vector.broadcast %cst_12 : f32 to vector<16x32xf32>
      %69 = arith.addf %64, %68 : vector<16x32xf32>
      %70 = arith.select %67, %69, %64 : vector<16x32xi1>, vector<16x32xf32>
      %71 = vector.extract_strided_slice %21 {offsets = [0, 8], sizes = [16, 1], strides = [1, 1]} : vector<16x9xi32> to vector<16x1xi32>
      %72 = vector.broadcast %71 : vector<16x1xi32> to vector<16x32xi32>
      %73 = arith.cmpi eq, %72, %19 : vector<16x32xi32>
      %cst_13 = arith.constant 6.250000e-02 : f32
      %74 = vector.broadcast %cst_13 : f32 to vector<16x32xf32>
      %75 = arith.addf %70, %74 : vector<16x32xf32>
      %76 = arith.select %73, %75, %70 : vector<16x32xi1>, vector<16x32xf32>
      %c0_14 = arith.constant 0 : index
      %c0_15 = arith.constant 0 : index
      %77 = vector.load %arg6[%c0_14, %c0_15] : memref<16x128xf32, #tpu.memory_space<vmem>>, vector<16x128xf32>
      %c0_16 = arith.constant 0 : index
      %c0_17 = arith.constant 0 : index
      %78 = vector.load %arg5[%c0_16, %c0_17] : memref<32x128xf32, #tpu.memory_space<vmem>>, vector<32x128xf32>
      %cst_18 = arith.constant dense<0.000000e+00> : vector<16x128xf32>
      %79 = tpu.matmul %76, %78, %cst_18 {dimension_numbers = #tpu.dot_dimension_numbers<[1], [0], [0], [1], [0, 0, 1, 1], [], []>} : vector<16x32xf32>, vector<32x128xf32>, vector<16x128xf32> -> vector<16x128xf32>
      %80 = arith.addf %77, %79 : vector<16x128xf32>
      %c0_19 = arith.constant 0 : index
      %c0_20 = arith.constant 0 : index
      %81 = vector.load %arg6[%c0_19, %c0_20] : memref<16x128xf32, #tpu.memory_space<vmem>>, vector<16x128xf32>
      tpu.vector_store %arg6[%c0_19, %c0_20], %80 {strides = array<i32>} : memref<16x128xf32, #tpu.memory_space<vmem>>, vector<16x128xf32>,
    } else {
    }
    %c1_i32 = arith.constant 1 : i32
    %8 = arith.subi %1, %c1_i32 : i32
    %9 = arith.cmpi eq, %arg1, %8 : i32
    %10 = arith.extui %9 : i1 to i32
    %c0_i32_2 = arith.constant 0 : i32
    %11 = arith.cmpi ne, %10, %c0_i32_2 : i32
    scf.if %11 {
      %c0 = arith.constant 0 : index
      %c0_3 = arith.constant 0 : index
      %12 = vector.load %arg6[%c0, %c0_3] : memref<16x128xf32, #tpu.memory_space<vmem>>, vector<16x128xf32>
      %13 = vector.extract_strided_slice %12 {offsets = [0, 8], sizes = [16, 1], strides = [1, 1]} : vector<16x128xf32> to vector<16x1xf32>
      %14 = vector.broadcast %13 : vector<16x1xf32> to vector<16x128xf32>
      %15 = arith.divf %12, %14 : vector<16x128xf32>
      %c0_4 = arith.constant 0 : index
      %c0_5 = arith.constant 0 : index
      %16 = vector.load %arg6[%c0_4, %c0_5] : memref<16x128xf32, #tpu.memory_space<vmem>>, vector<16x128xf32>
      tpu.vector_store %arg6[%c0_4, %c0_5], %15 {strides = array<i32>} : memref<16x128xf32, #tpu.memory_space<vmem>>, vector<16x128xf32>,
    } else {
    }
    return
  }
  func.func @transform_0(%arg0: i32, %arg1: i32, %arg2: memref<1xi32, #tpu.memory_space<smem>>, %arg3: memref<1xi32, #tpu.memory_space<smem>>) -> (i32, i32) {
    %c0_i32 = arith.constant 0 : i32
    %c0_i32_0 = arith.constant 0 : i32
    return %arg0, %c0_i32 : i32, i32
  }
  func.func @transform_1(%arg0: i32, %arg1: i32, %arg2: memref<1xi32, #tpu.memory_space<smem>>, %arg3: memref<1xi32, #tpu.memory_space<smem>>) -> (i32, i32) {
    %0 = arith.index_cast %arg0 : i32 to index
    %1 = memref.load %arg2[%0] : memref<1xi32, #tpu.memory_space<smem>>
    %2 = arith.addi %1, %arg1 : i32
    %c0_i32 = arith.constant 0 : i32
    %3 = arith.minsi %2, %c0_i32 : i32
    %c0_i32_0 = arith.constant 0 : i32
    %c0_i32_1 = arith.constant 0 : i32
    return %3, %c0_i32_0 : i32, i32
  }
  func.func @transform_2(%arg0: i32, %arg1: i32, %arg2: memref<1xi32, #tpu.memory_space<smem>>, %arg3: memref<1xi32, #tpu.memory_space<smem>>) -> (i32, i32) {
    %c0_i32 = arith.constant 0 : i32
    %c0_i32_0 = arith.constant 0 : i32
    return %arg0, %c0_i32 : i32, i32
  }
}

</mosaic_0001>

<llo_original>
// kernel: tpu_custom_call.1
$region0: #{tpu_custom_call.1}
  #allocation0 [shape = 'u32[]', space=smem, size = 0x4, offset = 0x4, fixed_abs, tag = 'smem constant byte address 0x4 - core index']
  #allocation1 [shape = 'u32[72,128]{1,0:T(1,128)}', space=vmem, size = 0x9000, scoped, tag = 'internal scratch']
  #allocation2 [shape = 's32[1]{0}', space=sflag, size = 0x4, scoped, tag = 'scoped memory for tpu_custom_call.1']
  #allocation3 [shape = 's32[1]{0:T(128)S(6)}', space=smem, size = 0x200, scoped, tag = 'prefetched SMEM operand 0']
  #allocation4 [shape = 's32[1]{0:T(128)S(6)}', space=smem, size = 0x200, scoped, tag = 'prefetched SMEM operand 1']
  %s0 = inlined_call_operand.<no memory space> [shape: s32[1], index: 0, kind: input, shape index: {}]
  %s1 = inlined_call_operand.<no memory space> [shape: s32[1], index: 1, kind: input, shape index: {}]
  %s2 = inlined_call_operand.hbm [shape: s32[16,9], index: 2, kind: input, shape index: {}]
  %s3 = inlined_call_operand.hbm [shape: f32[32,128], index: 3, kind: input, shape index: {}]
  %s4 = inlined_call_operand.hbm [shape: f32[16,128], index: 4, kind: output, shape index: {}]
  %s5 = sld [smem:[#allocation0]]
  $region38: #{tpu_custom_call.1} parent=0
    _
  %s7 = ssub.s32 1, %s5
  %s8 = scalar_select 0, %s7, %s5
  %9 = sst [smem:[#allocation3]] %s0
  %10 = sst [smem:[#allocation4]] %s1
  $region1: #{tpu_custom_call.1} parent=0
    #allocation5 [shape = 'u8[8192]{0}', space=vmem, size = 0x2000, scoped, tag = 'input window, operand 2, single buffered']
    #allocation6 [shape = 's32[1]{0}', space=sflag, size = 0x4, scoped, tag = 'scoped memory for tpu_custom_call.1']
    #allocation7 [shape = 's32[1]{0}', space=sflag, size = 0x4, scoped, tag = 'scoped memory for tpu_custom_call.1']
    #allocation8 [shape = 'u8[16384]{0}', space=vmem, size = 0x4000, scoped, tag = 'input window, operand 3, single buffered']
    #allocation9 [shape = 's32[1]{0}', space=sflag, size = 0x4, scoped, tag = 'scoped memory for tpu_custom_call.1']
    #allocation10 [shape = 'u8[8192]{0}', space=vmem, size = 0x2000, scoped, tag = 'output window, operand 0, single buffered']
    %11 = vsyncpa [#allocation6], 0
    %12 = vsyncpa [#allocation9], 0
    %13 = vsyncpa [#allocation7], 0
    // Predicated region
    $region2: #{tpu_custom_call.1} parent=1 // pred_check
      _
    $region3: #{tpu_custom_call.1} parent=1 // pred_check_branch
      %15 = sbr.rel (0) target = $region5
    $region4: #{tpu_custom_call.1} parent=1 // pred_region
      %17 = vsyncadd [#allocation6], 0
      %s18 = sshll.u32 %s2, 4
      %s19 = int_to_ptr.hbm [resolvable:$true] %s18
      %s20 = sshll.u32 [#allocation5], 4
      %s21 = int_to_ptr.vmem [resolvable:$true] %s20
      %26 = dma.hbm_to_vmem [thread:$0]  %s19, 256, %s21, [#allocation6], 128, 128, 8
    $region5: #{tpu_custom_call.1} parent=1 // pred_fallthru
      _
    // Predicated region
    $region6: #{tpu_custom_call.1} parent=1 // pred_check
      _
    $region7: #{tpu_custom_call.1} parent=1 // pred_check_branch
      %28 = sbr.rel (0) target = $region9
    $region8: #{tpu_custom_call.1} parent=1 // pred_region
      %s29 = sld [smem:[#allocation3]]
      %s30 = sadd.s32 %s29, 0
      %p31 = scmp.lt.s32.totalorder %s30, 0
      %s32 = scalar_select %p31, %s30, 0
      %s33 = smul.u32 4, %s32
      %35 = vsyncadd [#allocation9], 0
      %s36 = smul.addr %s33, 8
      %s37 = scalar_lea.hbm %s3, %s36
      %s38 = sshll.u32 %s37, 4
      %s39 = int_to_ptr.hbm [resolvable:$true] %s38
      %s40 = sshll.u32 [#allocation8], 4
      %s41 = int_to_ptr.vmem [resolvable:$true] %s40
      %46 = dma.hbm_to_vmem [thread:$0]  %s39, 512, %s41, [#allocation9], 128, 128, 8
    $region9: #{tpu_custom_call.1} parent=1 // pred_fallthru
      _
    // Predicated region
    $region10: #{tpu_custom_call.1} parent=1 // pred_check
      _
    $region11: #{tpu_custom_call.1} parent=1 // pred_check_branch
      %48 = sbr.rel (0) target = $region13
    $region12: #{tpu_custom_call.1} parent=1 // pred_region
      %50 = dma.done [#allocation6], 256
    $region13: #{tpu_custom_call.1} parent=1 // pred_fallthru
      _
    // Predicated region
    $region14: #{tpu_custom_call.1} parent=1 // pred_check
      _
    $region15: #{tpu_custom_call.1} parent=1 // pred_check_branch
      %52 = sbr.rel (0) target = $region17
    $region16: #{tpu_custom_call.1} parent=1 // pred_region
      %54 = dma.done [#allocation9], 512
    $region17: #{tpu_custom_call.1} parent=1 // pred_fallthru
      _
    %s55 = sld [smem:[#allocation3]]
    %s56 = sadd.s32 %s55, 0
    %p57 = scmp.lt.s32.totalorder %s56, 0
    %s58 = scalar_select %p57, %s56, 0
    %s59 = smul.u32 4, %s58
    %s60 = sld [smem:[#allocation4]]
    %p61 = scmp.eq.s32.totalorder 0, 0
    // Predicated region
    $region18: #{tpu_custom_call.1} parent=1 // pred_check
      %p62 = pneg %p61
    $region19: #{tpu_custom_call.1} parent=1 // pred_check_branch
      %64 = sbr.rel (%p62) target = $region21
    $region20: #{tpu_custom_call.1} parent=1 // pred_region
      %65 = vst [vmem:[#allocation10] sm:$0xff] 0.0
      %66 = vst [vmem:[#allocation10 + $0x8] sm:$0xff] 0.0
    $region21: #{tpu_custom_call.1} parent=1 // pred_fallthru
      _
    %p67 = scmp.lt.s32.totalorder 0, %s60
    // Predicated region
    $region22: #{tpu_custom_call.1} parent=1 // pred_check
      %p68 = pneg %p67
    $region23: #{tpu_custom_call.1} parent=1 // pred_check_branch
      %70 = sbr.rel (%p68) target = $region25
    $region24: #{tpu_custom_call.1} parent=1 // pred_region
      %s71 = sld [smem:[#allocation3]]
      %s72 = sadd.s32 %s71, 0
      %s73 = smul.u32 %s72, 32
      %v74 = vld [vmem:[#allocation5] sm:$0xff]
      %v75 = vld [vmem:[#allocation5 + $0x8] sm:$0xff]
      %v76 = vstv %s73
      %v77 = vsub.s32 %v74, %v76
      %v78 = vsub.s32 %v75, %v76
      %v79 = vlaneseq
      %v80 = vand.u32 %v79, 127
      %81 = vset.pattern.permute.xlu0 0
      %82 = vperm.xlu0 %81, %v77
      %v83 = vpop.permute.xlu0 %82
      %84 = vset.pattern.permute.xlu0 0
      %85 = vperm.xlu0 %84, %v78
      %v86 = vpop.permute.xlu0 %85
      %vm87 = vcmp.eq.s32.totalorder %v83, %v80
      %vm88 = vcmp.eq.s32.totalorder %v86, %v80
      %v89 = vsel %vm87, 0.25, 0.0
      %v90 = vsel %vm88, 0.25, 0.0
      %91 = vset.pattern.permute.xlu0 1
      %92 = vperm.xlu0 %91, %v77
      %v93 = vpop.permute.xlu0 %92
      %94 = vset.pattern.permute.xlu0 1
      %95 = vperm.xlu0 %94, %v78
      %v96 = vpop.permute.xlu0 %95
      %vm97 = vcmp.eq.s32.totalorder %v93, %v80
      %vm98 = vcmp.eq.s32.totalorder %v96, %v80
      %v99 = vadd.f32 %v89, 0.125
      %v100 = vadd.f32 %v90, 0.125
      %v101 = vsel %vm97, %v99, %v89
      %v102 = vsel %vm98, %v100, %v90
      %103 = vset.pattern.permute.xlu0 2
      %104 = vperm.xlu0 %103, %v77
      %v105 = vpop.permute.xlu0 %104
      %106 = vset.pattern.permute.xlu0 2
      %107 = vperm.xlu0 %106, %v78
      %v108 = vpop.permute.xlu0 %107
      %vm109 = vcmp.eq.s32.totalorder %v105, %v80
      %vm110 = vcmp.eq.s32.totalorder %v108, %v80
      %v111 = vadd.f32 %v101, 0.0625
      %v112 = vadd.f32 %v102, 0.0625
      %v113 = vsel %vm109, %v111, %v101
      %v114 = vsel %vm110, %v112, %v102
      %115 = vset.pattern.permute.xlu0 3
      %116 = vperm.xlu0 %115, %v77
      %v117 = vpop.permute.xlu0 %116
      %118 = vset.pattern.permute.xlu0 3
      %119 = vperm.xlu0 %118, %v78
      %v120 = vpop.permute.xlu0 %119
      %vm121 = vcmp.eq.s32.totalorder %v117, %v80
      %vm122 = vcmp.eq.s32.totalorder %v120, %v80
      %v123 = vadd.f32 %v113, 0.125
      %v124 = vadd.f32 %v114, 0.125
      %v125 = vsel %vm121, %v123, %v113
      %v126 = vsel %vm122, %v124, %v114
      %127 = vset.pattern.permute.xlu0 4
      %128 = vperm.xlu0 %127, %v77
      %v129 = vpop.permute.xlu0 %128
      %130 = vset.pattern.permute.xlu0 4
      %131 = vperm.xlu0 %130, %v78
      %v132 = vpop.permute.xlu0 %131
      %vm133 = vcmp.eq.s32.totalorder %v129, %v80
      %vm134 = vcmp.eq.s32.totalorder %v132, %v80
      %v135 = vadd.f32 %v125, 0.0625
      %v136 = vadd.f32 %v126, 0.0625
      %v137 = vsel %vm133, %v135, %v125
      %v138 = vsel %vm134, %v136, %v126
      %139 = vset.pattern.permute.xlu0 5
      %140 = vperm.xlu0 %139, %v77
      %v141 = vpop.permute.xlu0 %140
      %142 = vset.pattern.permute.xlu0 5
      %143 = vperm.xlu0 %142, %v78
      %v144 = vpop.permute.xlu0 %143
      %vm145 = vcmp.eq.s32.totalorder %v141, %v80
      %vm146 = vcmp.eq.s32.totalorder %v144, %v80
      %v147 = vadd.f32 %v137, 0.125
      %v148 = vadd.f32 %v138, 0.125
      %v149 = vsel %vm145, %v147, %v137
      %v150 = vsel %vm146, %v148, %v138
      %151 = vset.pattern.permute.xlu0 6
      %152 = vperm.xlu0 %151, %v77
      %v153 = vpop.permute.xlu0 %152
      %154 = vset.pattern.permute.xlu0 6
      %155 = vperm.xlu0 %154, %v78
      %v156 = vpop.permute.xlu0 %155
      %vm157 = vcmp.eq.s32.totalorder %v153, %v80
      %vm158 = vcmp.eq.s32.totalorder %v156, %v80
      %v159 = vadd.f32 %v149, 0.0625
      %v160 = vadd.f32 %v150, 0.0625
      %v161 = vsel %vm157, %v159, %v149
      %v162 = vsel %vm158, %v160, %v150
      %163 = vset.pattern.permute.xlu0 7
      %164 = vperm.xlu0 %163, %v77
      %v165 = vpop.permute.xlu0 %164
      %166 = vset.pattern.permute.xlu0 7
      %167 = vperm.xlu0 %166, %v78
      %v168 = vpop.permute.xlu0 %167
      %vm169 = vcmp.eq.s32.totalorder %v165, %v80
      %vm170 = vcmp.eq.s32.totalorder %v168, %v80
      %v171 = vadd.f32 %v161, 0.125
      %v172 = vadd.f32 %v162, 0.125
      %v173 = vsel %vm169, %v171, %v161
      %v174 = vsel %vm170, %v172, %v162
      %175 = vset.pattern.permute.xlu0 8
      %176 = vperm.xlu0 %175, %v77
      %v177 = vpop.permute.xlu0 %176
      %178 = vset.pattern.permute.xlu0 8
      %179 = vperm.xlu0 %178, %v78
      %v180 = vpop.permute.xlu0 %179
      %vm181 = vcmp.eq.s32.totalorder %v177, %v80
      %vm182 = vcmp.eq.s32.totalorder %v180, %v80
      %v183 = vadd.f32 %v173, 0.0625
      %v184 = vadd.f32 %v174, 0.0625
      %v185 = vsel %vm181, %v183, %v173
      %v186 = vsel %vm182, %v184, %v174
      %v187 = vld [vmem:[#allocation10] sm:$0xff]
      %v188 = vld [vmem:[#allocation10 + $0x8] sm:$0xff]
      %v189 = vld [vmem:[#allocation8] sm:$0xff]
      %v190 = vld [vmem:[#allocation8 + $0x8] sm:$0xff]
      %v191 = vld [vmem:[#allocation8 + $0x10] sm:$0xff]
      %v192 = vld [vmem:[#allocation8 + $0x18] sm:$0xff]
      %vm193 = vcmask 261120
      %v195 = vsel %vm193, %v185, 0
      %v198 = vsel %vm193, %v186, 0
      %200 = vmatpush.msra.mxu0 0.0
      %201 = vmatpush.msra.mxu0 0.0
      %202 = vmatpush.msra.mxu0 0.0
      %203 = vmatpush.msra.mxu0 0.0
      %204 = vmatpush.msra.mxu0 0.0
      %205 = vmatpush.msra.mxu0 0.0
      %206 = vmatpush.msra.mxu0 0.0
      %207 = vmatpush.msra.mxu0 0.0
      %208 = vmatpush.msra.mxu0 0.0
      %209 = vmatpush.msra.mxu0 0.0
      %210 = vmatpush.msra.mxu0 0.0
      %211 = vmatpush.msra.mxu0 0.0
      %212 = vmatpush.msra.mxu0 %v192
      %213 = vmatpush.msra.mxu0 %v191
      %214 = vmatpush.msra.mxu0 %v190
      %215 = vmatpush.msra.mxu0 %v189
      %216 = vmatmul.f32.gmra.mxu0 %v195
      %v217 = vpop.f32.mrf.mxu0
      %v218 = vadd.f32 0.0, %v217
      %219 = vmatmul.f32.gmra.mxu0 %v198
      %v220 = vpop.f32.mrf.mxu0
      %v221 = vadd.f32 0.0, %v220
      %222 = vdwg.mxu0
      %v223 = vadd.f32 %v187, %v218
      %v224 = vadd.f32 %v188, %v221
      %225 = vst [vmem:[#allocation10] sm:$0xff] %v223
      %226 = vst [vmem:[#allocation10 + $0x8] sm:$0xff] %v224
    $region25: #{tpu_custom_call.1} parent=1 // pred_fallthru
      _
    %s227 = ssub.s32 %s60, 1
    %p228 = scmp.eq.s32.totalorder 0, %s227
    // Predicated region
    $region26: #{tpu_custom_call.1} parent=1 // pred_check
      %p229 = pneg %p228
    $region27: #{tpu_custom_call.1} parent=1 // pred_check_branch
      %231 = sbr.rel (%p229) target = $region29
    $region28: #{tpu_custom_call.1} parent=1 // pred_region
      %v232 = vld [vmem:[#allocation10] sm:$0xff]
      %v233 = vld [vmem:[#allocation10 + $0x8] sm:$0xff]
      %235 = vset.pattern.permute.xlu0 8
      %236 = vperm.xlu0 %235, %v232
      %v237 = vpop.permute.xlu0 %236
      %240 = vset.pattern.permute.xlu0 8
      %241 = vperm.xlu0 %240, %v233
      %v242 = vpop.permute.xlu0 %241
      %v244 = vrcp.pop %v237
      %v245 = vmul.f32 %v237, %v244
      %v246 = vsub.f32 1.0, %v245
      %v247 = vmul.f32 %v244, %v246
      %v248 = vadd.f32 %v244, %v247
      %vm249 = vweird.f32 %v237
      %vm250 = vweird.f32 %v244
      %vm251 = vmor %vm249, %vm250
      %v252 = vsel %vm251, %v244, %v248
      %v253 = vand.u32 2147483647, %v237
      %vm254 = vcmp.eq.f32.partialorder %v253, 8.507059e+37
      %v255 = vand.u32 %v237, 2147483648
      %v256 = vor.u32 1.1754944e-38, %v255
      %v257 = vsel %vm254, %v256, %v252
      %v258 = vmul.f32 %v232, %v257
      %v259 = vrcp.pop %v242
      %v260 = vmul.f32 %v242, %v259
      %v261 = vsub.f32 1.0, %v260
      %v262 = vmul.f32 %v259, %v261
      %v263 = vadd.f32 %v259, %v262
      %vm264 = vweird.f32 %v242
      %vm265 = vweird.f32 %v259
      %vm266 = vmor %vm264, %vm265
      %v267 = vsel %vm266, %v259, %v263
      %v268 = vand.u32 2147483647, %v242
      %vm269 = vcmp.eq.f32.partialorder %v268, 8.507059e+37
      %v270 = vand.u32 %v242, 2147483648
      %v271 = vor.u32 1.1754944e-38, %v270
      %v272 = vsel %vm269, %v271, %v267
      %v273 = vmul.f32 %v233, %v272
      %274 = vst [vmem:[#allocation10] sm:$0xff] %v258
      %275 = vst [vmem:[#allocation10 + $0x8] sm:$0xff] %v273
    $region29: #{tpu_custom_call.1} parent=1 // pred_fallthru
      _
    // Predicated region
    $region30: #{tpu_custom_call.1} parent=1 // pred_check
      _
    $region31: #{tpu_custom_call.1} parent=1 // pred_check_branch
      %277 = sbr.rel (0) target = $region33
    $region32: #{tpu_custom_call.1} parent=1 // pred_region
      %279 = vsyncadd [#allocation7], 0
      %s280 = sshll.u32 [#allocation10], 4
      %s281 = int_to_ptr.vmem [resolvable:$true] %s280
      %s282 = sshll.u32 %s4, 4
      %s283 = int_to_ptr.hbm [resolvable:$true] %s282
      %288 = dma.vmem_to_hbm [thread:$0]  %s281, 256, %s283, [#allocation7], 128, 128, 8
    $region33: #{tpu_custom_call.1} parent=1 // pred_fallthru
      _
    // Predicated region
    $region34: #{tpu_custom_call.1} parent=1 // pred_check
      _
    $region35: #{tpu_custom_call.1} parent=1 // pred_check_branch
      %290 = sbr.rel (0) target = $region37
    $region36: #{tpu_custom_call.1} parent=1 // pred_region
      %292 = dma.done [#allocation7], 256
    $region37: #{tpu_custom_call.1} parent=1 // pred_fallthru
      _
    %293 = vsyncpa [#allocation6], 1
    %294 = vsyncpa [#allocation9], 1
    %295 = vsyncpa [#allocation7], 1

</llo_original>
